<compile_context>
chip_gen: v6e
topology: v6e:2x2x1
jax: 0.10.0
libtpu: 0.0.40
codegen_flags: <defaults>
</compile_context>

<pallas_src>
import functools
import math

import jax
import jax.numpy as jnp
from jax import lax
from jax.experimental import pallas as pl
from jax.experimental.pallas import tpu as pltpu


def _mha_kernel(x_ref, wq_ref, wk_ref, wv_ref, wo_ref, out_ref, *rest,
                with_attn):
    """One grid step handles one (batch, head) pair.

    x_ref   : (1, L, D)    VMEM  bf16
    wq_ref  : (1, D, hd)   VMEM  bf16  (1/sqrt(hd) folded in)
    wk_ref  : (1, D, hd)   VMEM  bf16
    wv_ref  : (1, D, hd)   VMEM  bf16
    wo_ref  : (1, hd, D)   VMEM  bf16  (per-head rows of Wo^T)
    out_ref : (1, L, D)    VMEM  f32   (same block for all h of a batch)
    rest    : [attn_ref (1, 1, L, L) f32]  + acc_ref scratch (L, D) f32
    """
    if with_attn:
        attn_ref, acc_ref = rest
    else:
        (acc_ref,) = rest

    h = pl.program_id(1)

    @pl.when(h == 0)
    def _():
        acc_ref[...] = jnp.zeros_like(acc_ref)

    x = x_ref[0]                                   # (L, D) bf16
    L = x.shape[0]

    # Per-head projections: full-D contraction on the MXU, f32 accumulate.
    qh = jnp.dot(x, wq_ref[0], preferred_element_type=jnp.float32)  # (L, hd)
    kh = jnp.dot(x, wk_ref[0], preferred_element_type=jnp.float32)
    vh = jnp.dot(x, wv_ref[0], preferred_element_type=jnp.float32)

    # Scores: contract the head dim of BOTH operands (no XLU transpose of K).
    s = lax.dot_general(qh.astype(jnp.bfloat16), kh.astype(jnp.bfloat16),
                        dimension_numbers=(((1,), (1,)), ((), ())),
                        preferred_element_type=jnp.float32)         # (L, L)

    # Causal mask.  The diagonal is always unmasked, so no row is ever fully
    # masked and the exp-sum is never zero (no 0*inf NaN risk).  If padding /
    # key masks are ever added, switch -inf to a large finite negative.
    row = lax.broadcasted_iota(jnp.int32, (L, L), 0)
    col = lax.broadcasted_iota(jnp.int32, (L, L), 1)
    s = jnp.where(row >= col, s, -jnp.inf)

    # Numerically stable softmax, entirely in f32; one reciprocal per row.
    s = s - jnp.max(s, axis=-1, keepdims=True)
    e = jnp.exp(s)
    p = e * pl.reciprocal(jnp.sum(e, axis=-1, keepdims=True), approx=False)

    if with_attn:
        attn_ref[0, 0] = p                         # per-head, per-batch block

    # P @ V on the MXU (bf16 operands, f32 accumulate).
    oh = jnp.dot(p.astype(jnp.bfloat16), vh.astype(jnp.bfloat16),
                 preferred_element_type=jnp.float32)                # (L, hd)

    # Per-head slice of the output projection, accumulated across the head
    # grid axis: concat_h(o_h) @ Wo^T == sum_h o_h @ Wo^T[h*hd:(h+1)*hd, :].
    acc_ref[...] += jnp.dot(oh.astype(jnp.bfloat16), wo_ref[0],
                            preferred_element_type=jnp.float32)

    @pl.when(h == pl.num_programs(1) - 1)
    def _():
        out_ref[0] = acc_ref[...].astype(out_ref.dtype)


def multihead_attention(x, wq, wk, wv, wo, num_heads, return_attention=False):
    """x: (B, L, D) f32; w*: (D, D) f32 in PyTorch nn.Linear (out, in) layout."""
    B, L, D = x.shape
    assert D % num_heads == 0
    H = num_heads
    hd = D // num_heads
    bf16 = jnp.bfloat16

    # Host-side (one-time) weight prep: per-head (D, hd) blocks in bf16 with
    # the attention scale folded into Wq; Wo^T split into per-head (hd, D)
    # row blocks.  y = x @ W convention inside the kernel.
    scale = 1.0 / math.sqrt(hd)
    wq_h = (wq.T * scale).reshape(D, H, hd).transpose(1, 0, 2).astype(bf16)
    wk_h = wk.T.reshape(D, H, hd).transpose(1, 0, 2).astype(bf16)
    wv_h = wv.T.reshape(D, H, hd).transpose(1, 0, 2).astype(bf16)
    wo_h = wo.T.reshape(H, hd, D).astype(bf16)
    x_bf = x.astype(bf16)

    kernel = functools.partial(_mha_kernel, with_attn=return_attention)

    out_shapes = [jax.ShapeDtypeStruct((B, L, D), jnp.float32)]
    out_specs = [pl.BlockSpec((1, L, D), lambda b, h: (b, 0, 0))]
    if return_attention:
        out_shapes.append(jax.ShapeDtypeStruct((B, H, L, L), jnp.float32))
        out_specs.append(pl.BlockSpec((1, 1, L, L), lambda b, h: (b, h, 0, 0)))

    # VMEM budget from the actual per-step footprint (double-buffered blocks,
    # f32 scratch accumulator, in-kernel temporaries), clamped to 32 MiB so it
    # stays well inside v7x's 64 MiB physical VMEM.
    f32b, b16b = 4, 2
    block_bytes = (2 * L * D * b16b                  # x block (bf16)
                   + 2 * 3 * D * hd * b16b           # per-head q/k/v weights
                   + 2 * hd * D * b16b               # per-head Wo^T rows
                   + 2 * L * D * f32b)               # out block (f32)
    if return_attention:
        block_bytes += 2 * L * L * f32b              # per-head attn block
    scratch_bytes = L * D * f32b
    temp_bytes = f32b * (4 * L * L + 6 * L * D)      # scores/probs + margins
    vmem_limit = int(min(32 * 1024 * 1024,
                         max(4 * 1024 * 1024,
                             2 * (block_bytes + scratch_bytes + temp_bytes))))

    result = pl.pallas_call(
        kernel,
        out_shape=tuple(out_shapes),
        grid_spec=pltpu.PrefetchScalarGridSpec(
            num_scalar_prefetch=0,
            grid=(B, H),
            in_specs=[
                pl.BlockSpec((1, L, D), lambda b, h: (b, 0, 0)),
                pl.BlockSpec((1, D, hd), lambda b, h: (h, 0, 0)),
                pl.BlockSpec((1, D, hd), lambda b, h: (h, 0, 0)),
                pl.BlockSpec((1, D, hd), lambda b, h: (h, 0, 0)),
                pl.BlockSpec((1, hd, D), lambda b, h: (h, 0, 0)),
            ],
            out_specs=tuple(out_specs),
            scratch_shapes=[pltpu.VMEM((L, D), jnp.float32)],
        ),
        compiler_params=pltpu.CompilerParams(
            dimension_semantics=("parallel", "arbitrary"),
            vmem_limit_bytes=vmem_limit,
        ),
    )(x_bf, wq_h, wk_h, wv_h, wo_h)

    if return_attention:
        return result          # (out, attn)
    return result[0]           # out only


def _xavier_uniform(key, shape):
    fan_out, fan_in = shape
    limit = math.sqrt(6.0 / (fan_in + fan_out))
    return jax.random.uniform(key, shape, jnp.float32, -limit, limit)


def _reference(x, wq, wk, wv, wo, num_heads):
    """Pure-JAX f32 reference mirroring the PyTorch forward exactly."""
    B, L, D = x.shape
    hd = D // num_heads
    q = x @ wq.T
    k = x @ wk.T
    v = x @ wv.T
    mask = jnp.tril(jnp.ones((L, L))) == 1
    outs, attns = [], []
    for h in range(num_heads):
        sl = slice(h * hd, (h + 1) * hd)
        s = (q[:, :, sl] @ jnp.swapaxes(k[:, :, sl], -1, -2)) / math.sqrt(hd)
        s = jnp.where(mask[None], s, -jnp.inf)
        a = jax.nn.softmax(s, axis=-1)
        outs.append(a @ v[:, :, sl])
        attns.append(a[:, None])
    out = jnp.concatenate(outs, axis=2) @ wo.T
    return out, jnp.concatenate(attns, axis=1)


if __name__ == "__main__":
    B, L, D, H = 2, 8, 32, 4

    key = jax.random.PRNGKey(0)
    kx, kq, kk, kv, ko = jax.random.split(key, 5)

    x = jax.random.normal(kx, (B, L, D), jnp.float32)
    wq = _xavier_uniform(kq, (D, D))   # (out, in) like nn.Linear.weight
    wk = _xavier_uniform(kk, (D, D))
    wv = _xavier_uniform(kv, (D, D))
    wo = _xavier_uniform(ko, (D, D))

    # Fast path: no attention writeback.
    out_only = multihead_attention(x, wq, wk, wv, wo, H, return_attention=False)
    out_only = jax.block_until_ready(out_only)

    # Full path: also returns the per-head attention probabilities.
    out, attn = multihead_attention(x, wq, wk, wv, wo, H, return_attention=True)
    out = jax.block_until_ready(out)
    attn = jax.block_until_ready(attn)

    ref_out, ref_attn = _reference(x, wq, wk, wv, wo, H)
    assert out_only.shape == (B, L, D)
    assert out.shape == (B, L, D)
    assert attn.shape == (B, H, L, L)
    # bf16 MXU operands (f32 accumulation) relax parity vs. the f32 reference.
    assert jnp.allclose(out_only, ref_out, rtol=5e-2, atol=5e-2)
    assert jnp.allclose(out, ref_out, rtol=5e-2, atol=5e-2)
    assert jnp.allclose(attn, ref_attn, rtol=5e-2, atol=5e-2)

    print("KERNEL_OK")
</pallas_src>

<mosaic_0001>
module attributes {stable_mosaic.version = 11 : i64} {
  func.func @_mha_kernel(%arg0: i32, %arg1: i32, %arg2: memref<1x8x32xbf16, #tpu.memory_space<vmem>>, %arg3: memref<1x32x8xbf16, #tpu.memory_space<vmem>>, %arg4: memref<1x32x8xbf16, #tpu.memory_space<vmem>>, %arg5: memref<1x32x8xbf16, #tpu.memory_space<vmem>>, %arg6: memref<1x8x32xbf16, #tpu.memory_space<vmem>>, %arg7: memref<1x8x32xf32, #tpu.memory_space<vmem>>, %arg8: memref<8x32xf32, #tpu.memory_space<vmem>>) attributes {dimension_semantics = [#tpu.dimension_semantics<parallel>, #tpu.dimension_semantics<arbitrary>], iteration_bounds = array<i64: 2, 4>, scalar_prefetch = 0 : i64, scratch_operands = 1 : i64, tpu.core_type = #tpu.core_type<tc>, window_params = [{transform_indices = @transform_0, window_bounds = array<i64: 1, 8, 32>}, {transform_indices = @transform_1, window_bounds = array<i64: 1, 32, 8>}, {transform_indices = @transform_2, window_bounds = array<i64: 1, 32, 8>}, {transform_indices = @transform_3, window_bounds = array<i64: 1, 32, 8>}, {transform_indices = @transform_4, window_bounds = array<i64: 1, 8, 32>}, {transform_indices = @transform_5, window_bounds = array<i64: 1, 8, 32>}]} {
    %c0_i32 = arith.constant 0 : i32
    %0 = arith.cmpi eq, %arg1, %c0_i32 : i32
    %1 = arith.extui %0 : i1 to i32
    %c0_i32_0 = arith.constant 0 : i32
    %2 = arith.cmpi ne, %1, %c0_i32_0 : i32
    scf.if %2 {
      %cst_28 = arith.constant 0.000000e+00 : f32
      %45 = vector.broadcast %cst_28 : f32 to vector<8x32xf32>
      %c0_29 = arith.constant 0 : index
      %c0_30 = arith.constant 0 : index
      %46 = vector.load %arg8[%c0_29, %c0_30] : memref<8x32xf32, #tpu.memory_space<vmem>>, vector<8x32xf32>
      tpu.vector_store %arg8[%c0_29, %c0_30], %45 {strides = array<i32>} : memref<8x32xf32, #tpu.memory_space<vmem>>, vector<8x32xf32>,
    } else {
    }
    %c0 = arith.constant 0 : index
    %c0_1 = arith.constant 0 : index
    %c0_2 = arith.constant 0 : index
    %3 = vector.load %arg2[%c0, %c0_1, %c0_2] : memref<1x8x32xbf16, #tpu.memory_space<vmem>>, vector<1x8x32xbf16>
    %4 = vector.shape_cast %3 : vector<1x8x32xbf16> to vector<8x32xbf16>
    %c0_3 = arith.constant 0 : index
    %c0_4 = arith.constant 0 : index
    %c0_5 = arith.constant 0 : index
    %5 = vector.load %arg3[%c0_3, %c0_4, %c0_5] : memref<1x32x8xbf16, #tpu.memory_space<vmem>>, vector<1x32x8xbf16>
    %6 = vector.shape_cast %5 : vector<1x32x8xbf16> to vector<32x8xbf16>
    %cst = arith.constant dense<0.000000e+00> : vector<8x8xf32>
    %7 = tpu.matmul %4, %6, %cst {dimension_numbers = #tpu.dot_dimension_numbers<[1], [0], [0], [1], [0, 0, 1, 1], [], []>} : vector<8x32xbf16>, vector<32x8xbf16>, vector<8x8xf32> -> vector<8x8xf32>
    %c0_6 = arith.constant 0 : index
    %c0_7 = arith.constant 0 : index
    %c0_8 = arith.constant 0 : index
    %8 = vector.load %arg4[%c0_6, %c0_7, %c0_8] : memref<1x32x8xbf16, #tpu.memory_space<vmem>>, vector<1x32x8xbf16>
    %9 = vector.shape_cast %8 : vector<1x32x8xbf16> to vector<32x8xbf16>
    %cst_9 = arith.constant dense<0.000000e+00> : vector<8x8xf32>
    %10 = tpu.matmul %4, %9, %cst_9 {dimension_numbers = #tpu.dot_dimension_numbers<[1], [0], [0], [1], [0, 0, 1, 1], [], []>} : vector<8x32xbf16>, vector<32x8xbf16>, vector<8x8xf32> -> vector<8x8xf32>
    %c0_10 = arith.constant 0 : index
    %c0_11 = arith.constant 0 : index
    %c0_12 = arith.constant 0 : index
    %11 = vector.load %arg5[%c0_10, %c0_11, %c0_12] : memref<1x32x8xbf16, #tpu.memory_space<vmem>>, vector<1x32x8xbf16>
    %12 = vector.shape_cast %11 : vector<1x32x8xbf16> to vector<32x8xbf16>
    %cst_13 = arith.constant dense<0.000000e+00> : vector<8x8xf32>
    %13 = tpu.matmul %4, %12, %cst_13 {dimension_numbers = #tpu.dot_dimension_numbers<[1], [0], [0], [1], [0, 0, 1, 1], [], []>} : vector<8x32xbf16>, vector<32x8xbf16>, vector<8x8xf32> -> vector<8x8xf32>
    %14 = arith.truncf %7 : vector<8x8xf32> to vector<8x8xbf16>
    %15 = arith.truncf %10 : vector<8x8xf32> to vector<8x8xbf16>
    %cst_14 = arith.constant dense<0.000000e+00> : vector<8x8xf32>
    %16 = tpu.matmul %14, %15, %cst_14 {dimension_numbers = #tpu.dot_dimension_numbers<[1], [1], [0], [0], [0, 0, 1, 0], [], []>} : vector<8x8xbf16>, vector<8x8xbf16>, vector<8x8xf32> -> vector<8x8xf32>
    %17 = tpu.iota {dimensions = array<i32: 0>} : vector<8x8xi32>
    %18 = tpu.iota {dimensions = array<i32: 1>} : vector<8x8xi32>
    %19 = arith.cmpi sge, %17, %18 : vector<8x8xi32>
    %cst_15 = arith.constant 0xFF800000 : f32
    %20 = vector.broadcast %cst_15 : f32 to vector<8x8xf32>
    %21 = arith.select %19, %16, %20 : vector<8x8xi1>, vector<8x8xf32>
    %cst_16 = arith.constant dense<0xFF800000> : vector<8xf32>
    %22 = vector.multi_reduction <maximumf>, %21, %cst_16 [1] : vector<8x8xf32> to vector<8xf32>
    %23 = vector.shape_cast %22 : vector<8xf32> to vector<8x1xf32>
    %24 = vector.broadcast %23 : vector<8x1xf32> to vector<8x8xf32>
    %25 = arith.subf %21, %24 : vector<8x8xf32>
    %26 = math.exp %25 : vector<8x8xf32>
    %cst_17 = arith.constant dense<0.000000e+00> : vector<8xf32>
    %27 = vector.multi_reduction <add>, %26, %cst_17 [1] : vector<8x8xf32> to vector<8xf32>
    %28 = vector.shape_cast %27 : vector<8xf32> to vector<8x1xf32>
    %29 = tpu.reciprocal %28 : vector<8x1xf32> -> vector<8x1xf32>
    %30 = vector.broadcast %29 : vector<8x1xf32> to vector<8x8xf32>
    %31 = arith.mulf %26, %30 : vector<8x8xf32>
    %32 = arith.truncf %31 : vector<8x8xf32> to vector<8x8xbf16>
    %33 = arith.truncf %13 : vector<8x8xf32> to vector<8x8xbf16>
    %cst_18 = arith.constant dense<0.000000e+00> : vector<8x8xf32>
    %34 = tpu.matmul %32, %33, %cst_18 {dimension_numbers = #tpu.dot_dimension_numbers<[1], [0], [0], [1], [0, 0, 1, 1], [], []>} : vector<8x8xbf16>, vector<8x8xbf16>, vector<8x8xf32> -> vector<8x8xf32>
    %c0_19 = arith.constant 0 : index
    %c0_20 = arith.constant 0 : index
    %35 = vector.load %arg8[%c0_19, %c0_20] : memref<8x32xf32, #tpu.memory_space<vmem>>, vector<8x32xf32>
    %36 = arith.truncf %34 : vector<8x8xf32> to vector<8x8xbf16>
    %c0_21 = arith.constant 0 : index
    %c0_22 = arith.constant 0 : index
    %c0_23 = arith.constant 0 : index
    %37 = vector.load %arg6[%c0_21, %c0_22, %c0_23] : memref<1x8x32xbf16, #tpu.memory_space<vmem>>, vector<1x8x32xbf16>
    %38 = vector.shape_cast %37 : vector<1x8x32xbf16> to vector<8x32xbf16>
    %cst_24 = arith.constant dense<0.000000e+00> : vector<8x32xf32>
    %39 = tpu.matmul %36, %38, %cst_24 {dimension_numbers = #tpu.dot_dimension_numbers<[1], [0], [0], [1], [0, 0, 1, 1], [], []>} : vector<8x8xbf16>, vector<8x32xbf16>, vector<8x32xf32> -> vector<8x32xf32>
    %40 = arith.addf %35, %39 : vector<8x32xf32>
    %c0_25 = arith.constant 0 : index
    %c0_26 = arith.constant 0 : index
    %41 = vector.load %arg8[%c0_25, %c0_26] : memref<8x32xf32, #tpu.memory_space<vmem>>, vector<8x32xf32>
    tpu.vector_store %arg8[%c0_25, %c0_26], %40 {strides = array<i32>} : memref<8x32xf32, #tpu.memory_space<vmem>>, vector<8x32xf32>,
    %c3_i32 = arith.constant 3 : i32
    %42 = arith.cmpi eq, %arg1, %c3_i32 : i32
    %43 = arith.extui %42 : i1 to i32
    %c0_i32_27 = arith.constant 0 : i32
    %44 = arith.cmpi ne, %43, %c0_i32_27 : i32
    scf.if %44 {
      %c0_28 = arith.constant 0 : index
      %c0_29 = arith.constant 0 : index
      %45 = vector.load %arg8[%c0_28, %c0_29] : memref<8x32xf32, #tpu.memory_space<vmem>>, vector<8x32xf32>
      %c0_30 = arith.constant 0 : index
      %c0_31 = arith.constant 0 : index
      %c0_32 = arith.constant 0 : index
      %46 = vector.load %arg7[%c0_30, %c0_31, %c0_32] : memref<1x8x32xf32, #tpu.memory_space<vmem>>, vector<1x8x32xf32>
      %47 = vector.shape_cast %46 : vector<1x8x32xf32> to vector<8x32xf32>
      %48 = vector.shape_cast %45 : vector<8x32xf32> to vector<1x8x32xf32>
      tpu.vector_store %arg7[%c0_30, %c0_31, %c0_32], %48 {strides = array<i32>} : memref<1x8x32xf32, #tpu.memory_space<vmem>>, vector<1x8x32xf32>,
    } else {
    }
    return
  }
  func.func @transform_0(%arg0: i32, %arg1: i32) -> (i32, i32, i32) {
    %c0_i32 = arith.constant 0 : i32
    %c0_i32_0 = arith.constant 0 : i32
    %c0_i32_1 = arith.constant 0 : i32
    return %arg0, %c0_i32, %c0_i32_0 : i32, i32, i32
  }
  func.func @transform_1(%arg0: i32, %arg1: i32) -> (i32, i32, i32) {
    %c0_i32 = arith.constant 0 : i32
    %c0_i32_0 = arith.constant 0 : i32
    %c0_i32_1 = arith.constant 0 : i32
    return %arg1, %c0_i32, %c0_i32_0 : i32, i32, i32
  }
  func.func @transform_2(%arg0: i32, %arg1: i32) -> (i32, i32, i32) {
    %c0_i32 = arith.constant 0 : i32
    %c0_i32_0 = arith.constant 0 : i32
    %c0_i32_1 = arith.constant 0 : i32
    return %arg1, %c0_i32, %c0_i32_0 : i32, i32, i32
  }
  func.func @transform_3(%arg0: i32, %arg1: i32) -> (i32, i32, i32) {
    %c0_i32 = arith.constant 0 : i32
    %c0_i32_0 = arith.constant 0 : i32
    %c0_i32_1 = arith.constant 0 : i32
    return %arg1, %c0_i32, %c0_i32_0 : i32, i32, i32
  }
  func.func @transform_4(%arg0: i32, %arg1: i32) -> (i32, i32, i32) {
    %c0_i32 = arith.constant 0 : i32
    %c0_i32_0 = arith.constant 0 : i32
    %c0_i32_1 = arith.constant 0 : i32
    return %arg1, %c0_i32, %c0_i32_0 : i32, i32, i32
  }
  func.func @transform_5(%arg0: i32, %arg1: i32) -> (i32, i32, i32) {
    %c0_i32 = arith.constant 0 : i32
    %c0_i32_0 = arith.constant 0 : i32
    %c0_i32_1 = arith.constant 0 : i32
    return %arg0, %c0_i32, %c0_i32_0 : i32, i32, i32
  }
}

</mosaic_0001>

<llo_original>
// kernel: tpu_custom_call.1
$region0: #{tpu_custom_call.1}
  #allocation0 [shape = 'u32[]', space=smem, size = 0x4, offset = 0x4, fixed_abs, tag = 'smem constant byte address 0x4 - core index']
  #allocation1 [shape = 'u32[144,128]{1,0:T(1,128)}', space=vmem, size = 0x12000, scoped, tag = 'internal scratch']
  #allocation2 [shape = 'f32[8,32]{1,0:T(8,128)}', space=vmem, size = 0x1000, scoped, tag = 'scratch operand']
  %s0 = inlined_call_operand.vmem [shape: bf16[2,8,32], index: 0, kind: input, shape index: {}]
  %s1 = inlined_call_operand.vmem [shape: bf16[4,32,8], index: 1, kind: input, shape index: {}]
  %s2 = inlined_call_operand.vmem [shape: bf16[4,32,8], index: 2, kind: input, shape index: {}]
  %s3 = inlined_call_operand.vmem [shape: bf16[4,32,8], index: 3, kind: input, shape index: {}]
  %s4 = inlined_call_operand.vmem [shape: bf16[4,8,32], index: 4, kind: input, shape index: {}]
  %s5 = inlined_call_operand.hbm [shape: f32[2,8,32], index: 5, kind: output, shape index: {}]
  %s6 = sld [smem:[#allocation0]]
  $region61: #{tpu_custom_call.1} parent=0
    _
  %s8 = ssub.s32 1, %s6
  %s9 = scalar_select 0, %s8, %s6
  $region1: #{tpu_custom_call.1} parent=0
    #allocation3 [shape = 'u8[8192]{0}', space=vmem, size = 0x2000, scoped, tag = 'output window, operand 0']
    #allocation4 [shape = 's32[2]{0}', space=sflag, size = 0x8, scoped, tag = 'scoped memory for tpu_custom_call.1']
    %10 = vsyncpa [#allocation4], 0
    %s11 = scalar_lea.sflag [#allocation4], 1
    %12 = vsyncpa %s11, 0
    loop: start=0, step=1, limit=10
    $region2: #{tpu_custom_call.1} parent=1 // loop_pre_header
      _
    $region3: #{tpu_custom_call.1} parent=1 // loop_header
      %s14 = sphi 0, %s18
      %p15 = scmp.ge.s32.totalorder %s14, 10
      %s21 = sphi 0, %s33
      %s22 = sphi 0, %s29
      %s23 = sphi 0, %s21
      %s24 = sphi 0, %s22
      %s25 = sphi 0, %s23
      %s26 = sphi 0, %s24
      %s36 = sphi 0, %s38
      %s39 = sphi 0, %s36
      %s40 = sphi 0, %s39
      %s56 = sphi 0, %s40
      %s62 = sphi 0, %s64
      %s65 = sphi 0, %s62
      %s66 = sphi 0, %s65
      %s82 = sphi 0, %s66
      %s88 = sphi 0, %s90
      %s91 = sphi 0, %s88
      %s92 = sphi 0, %s91
      %s108 = sphi 0, %s92
      %s114 = sphi 0, %s116
      %s117 = sphi 0, %s114
      %s118 = sphi 0, %s117
      %s134 = sphi 0, %s118
      %s140 = sphi 0, %s142
      %s143 = sphi 0, %s140
      %s144 = sphi 0, %s143
      %s160 = sphi 0, %s144
      %s166 = sphi 0, %s168
      %s169 = sphi 0, %s166
      %s170 = sphi 0, %s169
      %s186 = sphi 0, %s170
    $region4: #{tpu_custom_call.1} parent=1 // loop_header_branch
      %17 = sbr.rel (%p15) target = $region8
    $region5: #{tpu_custom_call.1} parent=1 // loop_body
      %s19 = ssub.s32 %s14, 1
      %s20 = ssub.s32 %s14, 2
      %s27 = sadd.s32 1, %s22
      %p28 = scmp.ge.s32.totalorder %s27, 4
      %s29 = scalar_select %p28, 0, %s27
      %s30 = sadd.s32 1, %s21
      %s31 = scalar_select %p28, %s30, %s21
      %p32 = scmp.ge.s32.totalorder %s31, 2
      %s33 = scalar_select %p32, 0, %s31
      %s34 = ssub.s32 %s21, %s33
      %p35 = scmp.eq.s32.totalorder %s34, 0
      %s37 = sadd.s32 %s36, 1
      %s38 = scalar_select %p35, %s36, %s37
      %p41 = pneg %p35
      %p42 = scmp.eq.s32.totalorder %s14, 7
      %p43 = por %p41, %p42
      %p44 = scmp.ne.s32.totalorder %s36, %s39
      %p45 = scmp.eq.s32.totalorder %s14, 0
      %p46 = por %p44, %p45
      %p47 = scmp.ne.s32.totalorder %s36, %s39
      %p48 = scmp.eq.s32.totalorder %s19, 7
      %p49 = por %p47, %p48
      %p50 = scmp.ne.s32.totalorder %s39, %s40
      %p51 = scmp.eq.s32.totalorder %s19, 0
      %p52 = por %p50, %p51
      %p53 = scmp.ne.s32.totalorder %s39, %s40
      %p54 = scmp.eq.s32.totalorder %s20, 7
      %p55 = por %p53, %p54
      %p57 = scmp.ne.s32.totalorder %s40, %s56
      %p58 = scmp.eq.s32.totalorder %s20, 0
      %p59 = por %p57, %p58
      %s60 = ssub.s32 %s22, %s29
      %p61 = scmp.eq.s32.totalorder %s60, 0
      %s63 = sadd.s32 %s62, 1
      %s64 = scalar_select %p61, %s62, %s63
      %p67 = pneg %p61
      %p68 = scmp.eq.s32.totalorder %s14, 7
      %p69 = por %p67, %p68
      %p70 = scmp.ne.s32.totalorder %s62, %s65
      %p71 = scmp.eq.s32.totalorder %s14, 0
      %p72 = por %p70, %p71
      %p73 = scmp.ne.s32.totalorder %s62, %s65
      %p74 = scmp.eq.s32.totalorder %s19, 7
      %p75 = por %p73, %p74
      %p76 = scmp.ne.s32.totalorder %s65, %s66
      %p77 = scmp.eq.s32.totalorder %s19, 0
      %p78 = por %p76, %p77
      %p79 = scmp.ne.s32.totalorder %s65, %s66
      %p80 = scmp.eq.s32.totalorder %s20, 7
      %p81 = por %p79, %p80
      %p83 = scmp.ne.s32.totalorder %s66, %s82
      %p84 = scmp.eq.s32.totalorder %s20, 0
      %p85 = por %p83, %p84
      %s86 = ssub.s32 %s22, %s29
      %p87 = scmp.eq.s32.totalorder %s86, 0
      %s89 = sadd.s32 %s88, 1
      %s90 = scalar_select %p87, %s88, %s89
      %p93 = pneg %p87
      %p94 = scmp.eq.s32.totalorder %s14, 7
      %p95 = por %p93, %p94
      %p96 = scmp.ne.s32.totalorder %s88, %s91
      %p97 = scmp.eq.s32.totalorder %s14, 0
      %p98 = por %p96, %p97
      %p99 = scmp.ne.s32.totalorder %s88, %s91
      %p100 = scmp.eq.s32.totalorder %s19, 7
      %p101 = por %p99, %p100
      %p102 = scmp.ne.s32.totalorder %s91, %s92
      %p103 = scmp.eq.s32.totalorder %s19, 0
      %p104 = por %p102, %p103
      %p105 = scmp.ne.s32.totalorder %s91, %s92
      %p106 = scmp.eq.s32.totalorder %s20, 7
      %p107 = por %p105, %p106
      %p109 = scmp.ne.s32.totalorder %s92, %s108
      %p110 = scmp.eq.s32.totalorder %s20, 0
      %p111 = por %p109, %p110
      %s112 = ssub.s32 %s22, %s29
      %p113 = scmp.eq.s32.totalorder %s112, 0
      %s115 = sadd.s32 %s114, 1
      %s116 = scalar_select %p113, %s114, %s115
      %p119 = pneg %p113
      %p120 = scmp.eq.s32.totalorder %s14, 7
      %p121 = por %p119, %p120
      %p122 = scmp.ne.s32.totalorder %s114, %s117
      %p123 = scmp.eq.s32.totalorder %s14, 0
      %p124 = por %p122, %p123
      %p125 = scmp.ne.s32.totalorder %s114, %s117
      %p126 = scmp.eq.s32.totalorder %s19, 7
      %p127 = por %p125, %p126
      %p128 = scmp.ne.s32.totalorder %s117, %s118
      %p129 = scmp.eq.s32.totalorder %s19, 0
      %p130 = por %p128, %p129
      %p131 = scmp.ne.s32.totalorder %s117, %s118
      %p132 = scmp.eq.s32.totalorder %s20, 7
      %p133 = por %p131, %p132
      %p135 = scmp.ne.s32.totalorder %s118, %s134
      %p136 = scmp.eq.s32.totalorder %s20, 0
      %p137 = por %p135, %p136
      %s138 = ssub.s32 %s22, %s29
      %p139 = scmp.eq.s32.totalorder %s138, 0
      %s141 = sadd.s32 %s140, 1
      %s142 = scalar_select %p139, %s140, %s141
      %p145 = pneg %p139
      %p146 = scmp.eq.s32.totalorder %s14, 7
      %p147 = por %p145, %p146
      %p148 = scmp.ne.s32.totalorder %s140, %s143
      %p149 = scmp.eq.s32.totalorder %s14, 0
      %p150 = por %p148, %p149
      %p151 = scmp.ne.s32.totalorder %s140, %s143
      %p152 = scmp.eq.s32.totalorder %s19, 7
      %p153 = por %p151, %p152
      %p154 = scmp.ne.s32.totalorder %s143, %s144
      %p155 = scmp.eq.s32.totalorder %s19, 0
      %p156 = por %p154, %p155
      %p157 = scmp.ne.s32.totalorder %s143, %s144
      %p158 = scmp.eq.s32.totalorder %s20, 7
      %p159 = por %p157, %p158
      %p161 = scmp.ne.s32.totalorder %s144, %s160
      %p162 = scmp.eq.s32.totalorder %s20, 0
      %p163 = por %p161, %p162
      %s164 = ssub.s32 %s21, %s33
      %p165 = scmp.eq.s32.totalorder %s164, 0
      %s167 = sadd.s32 %s166, 1
      %s168 = scalar_select %p165, %s166, %s167
      %p171 = pneg %p165
      %p172 = scmp.eq.s32.totalorder %s14, 7
      %p173 = por %p171, %p172
      %p174 = scmp.ne.s32.totalorder %s166, %s169
      %p175 = scmp.eq.s32.totalorder %s14, 0
      %p176 = por %p174, %p175
      %p177 = scmp.ne.s32.totalorder %s166, %s169
      %p178 = scmp.eq.s32.totalorder %s19, 7
      %p179 = por %p177, %p178
      %p180 = scmp.ne.s32.totalorder %s169, %s170
      %p181 = scmp.eq.s32.totalorder %s19, 0
      %p182 = por %p180, %p181
      %p183 = scmp.ne.s32.totalorder %s169, %s170
      %p184 = scmp.eq.s32.totalorder %s20, 7
      %p185 = por %p183, %p184
      %p187 = scmp.ne.s32.totalorder %s170, %s186
      %p188 = scmp.eq.s32.totalorder %s20, 0
      %p189 = por %p187, %p188
      %p190 = scmp.le.s32.totalorder 1, %s14
      %p191 = scmp.lt.s32.totalorder %s14, 9
      %p192 = pnand %p190, %p191
      %p193 = pneg %p192
      // Predicated region
      $region9: #{tpu_custom_call.1} parent=5 // pred_check
        _
      $region10: #{tpu_custom_call.1} parent=5 // pred_check_branch
        %195 = sbr.rel (%p192) target = $region12
      $region11: #{tpu_custom_call.1} parent=5 // pred_region
        %s196 = ssub.s32 %s14, 1
      $region12: #{tpu_custom_call.1} parent=5 // pred_fallthru
        _
      %p197 = scmp.lt.s32.totalorder %s14, 8
      // Predicated region
      $region13: #{tpu_custom_call.1} parent=5 // pred_check
        %p198 = pneg %p197
      $region14: #{tpu_custom_call.1} parent=5 // pred_check_branch
        %200 = sbr.rel (%p198) target = $region16
      $region15: #{tpu_custom_call.1} parent=5 // pred_region
        // Predicated region
        $region17: #{tpu_custom_call.1} parent=15 // pred_check
          %p201 = pneg %p46
        $region18: #{tpu_custom_call.1} parent=15 // pred_check_branch
          %203 = sbr.rel (%p201) target = $region20
        $region19: #{tpu_custom_call.1} parent=15 // pred_region
          %p204 = scmp.lt.s32.totalorder %s21, 1
          %s205 = scalar_select %p204, %s21, 1
          %s206 = smul.addr %s205, 4
          %s207 = scalar_lea.vmem %s0, %s206
        $region20: #{tpu_custom_call.1} parent=15 // pred_fallthru
          _
        // Predicated region
        $region21: #{tpu_custom_call.1} parent=15 // pred_check
          %p208 = pneg %p72
        $region22: #{tpu_custom_call.1} parent=15 // pred_check_branch
          %210 = sbr.rel (%p208) target = $region24
        $region23: #{tpu_custom_call.1} parent=15 // pred_region
          %p211 = scmp.lt.s32.totalorder %s22, 3
          %s212 = scalar_select %p211, %s22, 3
          %s213 = smul.addr %s212, 4
          %s214 = smul.addr %s213, 4
          %s215 = scalar_lea.vmem %s1, %s214
        $region24: #{tpu_custom_call.1} parent=15 // pred_fallthru
          _
        // Predicated region
        $region25: #{tpu_custom_call.1} parent=15 // pred_check
          %p216 = pneg %p98
        $region26: #{tpu_custom_call.1} parent=15 // pred_check_branch
          %218 = sbr.rel (%p216) target = $region28
        $region27: #{tpu_custom_call.1} parent=15 // pred_region
          %p219 = scmp.lt.s32.totalorder %s22, 3
          %s220 = scalar_select %p219, %s22, 3
          %s221 = smul.addr %s220, 4
          %s222 = smul.addr %s221, 4
          %s223 = scalar_lea.vmem %s2, %s222
        $region28: #{tpu_custom_call.1} parent=15 // pred_fallthru
          _
        // Predicated region
        $region29: #{tpu_custom_call.1} parent=15 // pred_check
          %p224 = pneg %p124
        $region30: #{tpu_custom_call.1} parent=15 // pred_check_branch
          %226 = sbr.rel (%p224) target = $region32
        $region31: #{tpu_custom_call.1} parent=15 // pred_region
          %p227 = scmp.lt.s32.totalorder %s22, 3
          %s228 = scalar_select %p227, %s22, 3
          %s229 = smul.addr %s228, 4
          %s230 = smul.addr %s229, 4
          %s231 = scalar_lea.vmem %s3, %s230
        $region32: #{tpu_custom_call.1} parent=15 // pred_fallthru
          _
        // Predicated region
        $region33: #{tpu_custom_call.1} parent=15 // pred_check
          %p232 = pneg %p150
        $region34: #{tpu_custom_call.1} parent=15 // pred_check_branch
          %234 = sbr.rel (%p232) target = $region36
        $region35: #{tpu_custom_call.1} parent=15 // pred_region
          %p235 = scmp.lt.s32.totalorder %s22, 3
          %s236 = scalar_select %p235, %s22, 3
          %s237 = smul.addr %s236, 4
          %s238 = scalar_lea.vmem %s4, %s237
        $region36: #{tpu_custom_call.1} parent=15 // pred_fallthru
          _
      $region16: #{tpu_custom_call.1} parent=5 // pred_fallthru
        _
      %p239 = scmp.le.s32.totalorder 1, %s14
      %p240 = scmp.lt.s32.totalorder %s14, 9
      %p241 = pnand %p239, %p240
      %p242 = pneg %p241
      // Predicated region
      $region37: #{tpu_custom_call.1} parent=5 // pred_check
        _
      $region38: #{tpu_custom_call.1} parent=5 // pred_check_branch
        %244 = sbr.rel (%p241) target = $region40
      $region39: #{tpu_custom_call.1} parent=5 // pred_region
        %s245 = ssub.s32 %s14, 1
        %p246 = scmp.lt.s32.totalorder %s23, 1
        %s247 = scalar_select %p246, %s23, 1
        %s248 = smul.addr %s247, 4
        %s249 = scalar_lea.vmem %s0, %s248
        %p250 = pneg %p52
        %p251 = pneg %p49
        %p252 = scmp.lt.s32.totalorder %s24, 3
        %s253 = scalar_select %p252, %s24, 3
        %s254 = smul.addr %s253, 4
        %s255 = smul.addr %s254, 4
        %s256 = scalar_lea.vmem %s1, %s255
        %p257 = pneg %p78
        %p258 = pneg %p75
        %p259 = scmp.lt.s32.totalorder %s24, 3
        %s260 = scalar_select %p259, %s24, 3
        %s261 = smul.addr %s260, 4
        %s262 = smul.addr %s261, 4
        %s263 = scalar_lea.vmem %s2, %s262
        %p264 = pneg %p104
        %p265 = pneg %p101
        %p266 = scmp.lt.s32.totalorder %s24, 3
        %s267 = scalar_select %p266, %s24, 3
        %s268 = smul.addr %s267, 4
        %s269 = smul.addr %s268, 4
        %s270 = scalar_lea.vmem %s3, %s269
        %p271 = pneg %p130
        %p272 = pneg %p127
        %p273 = scmp.lt.s32.totalorder %s24, 3
        %s274 = scalar_select %p273, %s24, 3
        %s275 = smul.addr %s274, 4
        %s276 = scalar_lea.vmem %s4, %s275
        %p277 = pneg %p156
        %p278 = pneg %p153
        %p279 = pneg %p182
        %p280 = pneg %p179
        %s281 = sand.u32 %s169, 1
        %s282 = scalar_lea.sflag [#allocation4], %s281
        %s283 = sand.u32 %s169, 1
        %s284 = smul.addr %s283, 8
        %s285 = scalar_lea.vmem [#allocation3], %s284
        %p286 = scmp.lt.s32.totalorder %s23, 1
        %s287 = scalar_select %p286, %s23, 1
        %s288 = smul.addr %s287, 4
        %s289 = scalar_lea.vmem %s0, %s288
        %p290 = scmp.lt.s32.totalorder %s24, 3
        %s291 = scalar_select %p290, %s24, 3
        %s292 = smul.addr %s291, 4
        %s293 = smul.addr %s292, 4
        %s294 = scalar_lea.vmem %s1, %s293
        %p295 = scmp.lt.s32.totalorder %s24, 3
        %s296 = scalar_select %p295, %s24, 3
        %s297 = smul.addr %s296, 4
        %s298 = smul.addr %s297, 4
        %s299 = scalar_lea.vmem %s2, %s298
        %p300 = scmp.lt.s32.totalorder %s24, 3
        %s301 = scalar_select %p300, %s24, 3
        %s302 = smul.addr %s301, 4
        %s303 = smul.addr %s302, 4
        %s304 = scalar_lea.vmem %s3, %s303
        %p305 = scmp.lt.s32.totalorder %s24, 3
        %s306 = scalar_select %p305, %s24, 3
        %s307 = smul.addr %s306, 4
        %s308 = scalar_lea.vmem %s4, %s307
        %p310 = scmp.eq.s32.totalorder %s24, 0
        // Predicated region
        $region41: #{tpu_custom_call.1} parent=39 // pred_check
          %p311 = pneg %p310
        $region42: #{tpu_custom_call.1} parent=39 // pred_check_branch
          %313 = sbr.rel (%p311) target = $region44
        $region43: #{tpu_custom_call.1} parent=39 // pred_region
          %vm314 = vcmask 261120
          %315 = vst.msk [vmem:[#allocation2] sm:$0xff] %vm314, 0.0
        $region44: #{tpu_custom_call.1} parent=39 // pred_fallthru
          _
        %v316 = vld [vmem:[%s289] sm:$0xf]
        %v317 = vld [vmem:[%s294] sm:$0xf]
        %v318 = vld [vmem:[%s294 + $0x4] sm:$0xf]
        %v319 = vld [vmem:[%s294 + $0x8] sm:$0xf]
        %v320 = vld [vmem:[%s294 + $0xc] sm:$0xf]
        %v325 = vunpack.c.l.b16 %v317
        %v326 = vunpack.c.l.b16 %v318
        %v327 = vunpack.c.l.b16 %v319
        %v328 = vunpack.c.l.b16 %v320
        %v329 = vpack.c.b16 %v326, %v325
        %v330 = vpack.c.b16 %v328, %v327
        %vm333 = vcmask 261120
        %v335 = vsel %vm333, %v316, 0
        %337 = vmatprep.subr.bf16.mxu0 0
        %338 = vmatpush1.bf16.msra.mxu0 0
        %339 = vmatprep.subr.bf16.mxu0 0
        %340 = vmatpush1.bf16.msra.mxu0 0
        %341 = vmatprep.subr.bf16.mxu0 0
        %342 = vmatpush1.bf16.msra.mxu0 0
        %343 = vmatprep.subr.bf16.mxu0 0
        %344 = vmatpush1.bf16.msra.mxu0 0
        %345 = vmatprep.subr.bf16.mxu0 0
        %346 = vmatpush1.bf16.msra.mxu0 0
        %347 = vmatprep.subr.bf16.mxu0 0
        %348 = vmatpush1.bf16.msra.mxu0 0
        %349 = vmatprep.subr.bf16.mxu0 0
        %350 = vmatpush1.bf16.msra.mxu0 %v330
        %351 = vmatprep.subr.bf16.mxu0 0
        %352 = vmatpush1.bf16.msra.mxu0 %v329
        %353 = vmatprep.subr.bf16.mxu0 0
        %354 = vmatpush2.bf16.msra.mxu0 0
        %355 = vmatprep.subr.bf16.mxu0 0
        %356 = vmatpush2.bf16.msra.mxu0 0
        %357 = vmatprep.subr.bf16.mxu0 0
        %358 = vmatpush2.bf16.msra.mxu0 0
        %359 = vmatprep.subr.bf16.mxu0 0
        %360 = vmatpush2.bf16.msra.mxu0 0
        %361 = vmatprep.subr.bf16.mxu0 0
        %362 = vmatpush2.bf16.msra.mxu0 0
        %363 = vmatprep.subr.bf16.mxu0 0
        %364 = vmatpush2.bf16.msra.mxu0 0
        %365 = vmatprep.subr.bf16.mxu0 0
        %366 = vmatpush2.bf16.msra.mxu0 0
        %367 = vmatprep.subr.bf16.mxu0 0
        %368 = vmatpush2.bf16.msra.mxu0 0
        %369 = vmatprep.mubr.bf16.mxu0 0
        %370 = vmatmul.mubr.bf16.gmra.mxu0 %v335
        %v371 = vpop.f32.mrf.mxu0
        %v372 = vadd.f32 0.0, %v371
        %v373 = vpop.f32.mrf.mxu0
        %v374 = vpop.f32.mrf.mxu0
        %v375 = vpop.f32.mrf.mxu0
        %376 = vdwg.mxu0
        %v377 = vld [vmem:[%s299] sm:$0xf]
        %v378 = vld [vmem:[%s299 + $0x4] sm:$0xf]
        %v379 = vld [vmem:[%s299 + $0x8] sm:$0xf]
        %v380 = vld [vmem:[%s299 + $0xc] sm:$0xf]
        %v385 = vunpack.c.l.b16 %v377
        %v386 = vunpack.c.l.b16 %v378
        %v387 = vunpack.c.l.b16 %v379
        %v388 = vunpack.c.l.b16 %v380
        %v389 = vpack.c.b16 %v386, %v385
        %v390 = vpack.c.b16 %v388, %v387
        %393 = vmatprep.subr.bf16.mxu0 0
        %394 = vmatpush1.bf16.msra.mxu0 0
        %395 = vmatprep.subr.bf16.mxu0 0
        %396 = vmatpush1.bf16.msra.mxu0 0
        %397 = vmatprep.subr.bf16.mxu0 0
        %398 = vmatpush1.bf16.msra.mxu0 0
        %399 = vmatprep.subr.bf16.mxu0 0
        %400 = vmatpush1.bf16.msra.mxu0 0
        %401 = vmatprep.subr.bf16.mxu0 0
        %402 = vmatpush1.bf16.msra.mxu0 0
        %403 = vmatprep.subr.bf16.mxu0 0
        %404 = vmatpush1.bf16.msra.mxu0 0
        %405 = vmatprep.subr.bf16.mxu0 0
        %406 = vmatpush1.bf16.msra.mxu0 %v390
        %407 = vmatprep.subr.bf16.mxu0 0
        %408 = vmatpush1.bf16.msra.mxu0 %v389
        %409 = vmatprep.subr.bf16.mxu0 0
        %410 = vmatpush2.bf16.msra.mxu0 0
        %411 = vmatprep.subr.bf16.mxu0 0
        %412 = vmatpush2.bf16.msra.mxu0 0
        %413 = vmatprep.subr.bf16.mxu0 0
        %414 = vmatpush2.bf16.msra.mxu0 0
        %415 = vmatprep.subr.bf16.mxu0 0
        %416 = vmatpush2.bf16.msra.mxu0 0
        %417 = vmatprep.subr.bf16.mxu0 0
        %418 = vmatpush2.bf16.msra.mxu0 0
        %419 = vmatprep.subr.bf16.mxu0 0
        %420 = vmatpush2.bf16.msra.mxu0 0
        %421 = vmatprep.subr.bf16.mxu0 0
        %422 = vmatpush2.bf16.msra.mxu0 0
        %423 = vmatprep.subr.bf16.mxu0 0
        %424 = vmatpush2.bf16.msra.mxu0 0
        %425 = vmatprep.mubr.bf16.mxu0 0
        %426 = vmatmul.mubr.bf16.gmra.mxu0 %v335
        %v427 = vpop.f32.mrf.mxu0
        %v428 = vadd.f32 0.0, %v427
        %v429 = vpop.f32.mrf.mxu0
        %v430 = vpop.f32.mrf.mxu0
        %v431 = vpop.f32.mrf.mxu0
        %432 = vdwg.mxu0
        %v433 = vld [vmem:[%s304] sm:$0xf]
        %v434 = vld [vmem:[%s304 + $0x4] sm:$0xf]
        %v435 = vld [vmem:[%s304 + $0x8] sm:$0xf]
        %v436 = vld [vmem:[%s304 + $0xc] sm:$0xf]
        %v441 = vunpack.c.l.b16 %v433
        %v442 = vunpack.c.l.b16 %v434
        %v443 = vunpack.c.l.b16 %v435
        %v444 = vunpack.c.l.b16 %v436
        %v445 = vpack.c.b16 %v442, %v441
        %v446 = vpack.c.b16 %v444, %v443
        %449 = vmatprep.subr.bf16.mxu0 0
        %450 = vmatpush1.bf16.msra.mxu0 0
        %451 = vmatprep.subr.bf16.mxu0 0
        %452 = vmatpush1.bf16.msra.mxu0 0
        %453 = vmatprep.subr.bf16.mxu0 0
        %454 = vmatpush1.bf16.msra.mxu0 0
        %455 = vmatprep.subr.bf16.mxu0 0
        %456 = vmatpush1.bf16.msra.mxu0 0
        %457 = vmatprep.subr.bf16.mxu0 0
        %458 = vmatpush1.bf16.msra.mxu0 0
        %459 = vmatprep.subr.bf16.mxu0 0
        %460 = vmatpush1.bf16.msra.mxu0 0
        %461 = vmatprep.subr.bf16.mxu0 0
        %462 = vmatpush1.bf16.msra.mxu0 %v446
        %463 = vmatprep.subr.bf16.mxu0 0
        %464 = vmatpush1.bf16.msra.mxu0 %v445
        %465 = vmatprep.subr.bf16.mxu0 0
        %466 = vmatpush2.bf16.msra.mxu0 0
        %467 = vmatprep.subr.bf16.mxu0 0
        %468 = vmatpush2.bf16.msra.mxu0 0
        %469 = vmatprep.subr.bf16.mxu0 0
        %470 = vmatpush2.bf16.msra.mxu0 0
        %471 = vmatprep.subr.bf16.mxu0 0
        %472 = vmatpush2.bf16.msra.mxu0 0
        %473 = vmatprep.subr.bf16.mxu0 0
        %474 = vmatpush2.bf16.msra.mxu0 0
        %475 = vmatprep.subr.bf16.mxu0 0
        %476 = vmatpush2.bf16.msra.mxu0 0
        %477 = vmatprep.subr.bf16.mxu0 0
        %478 = vmatpush2.bf16.msra.mxu0 0
        %479 = vmatprep.subr.bf16.mxu0 0
        %480 = vmatpush2.bf16.msra.mxu0 0
        %481 = vmatprep.mubr.bf16.mxu0 0
        %482 = vmatmul.mubr.bf16.gmra.mxu0 %v335
        %v483 = vpop.f32.mrf.mxu0
        %v484 = vadd.f32 0.0, %v483
        %v485 = vpop.f32.mrf.mxu0
        %v486 = vpop.f32.mrf.mxu0
        %v487 = vpop.f32.mrf.mxu0
        %488 = vdwg.mxu0
        %v489 = vpack.c.bf16 %v372, %v372
        %v490 = vpack.c.bf16 %v428, %v428
        %vm491 = vcmask 64512
        %v493 = vsel %vm491, %v489, 0
        %v496 = vsel %vm491, %v490, 0
        %498 = vmatprep.subr.bf16.mxu0 0
        %499 = vmatpush1.bf16.xpose.msra.mxu0 0
        %500 = vmatprep.subr.bf16.mxu0 0
        %501 = vmatpush1.bf16.xpose.msra.mxu0 0
        %502 = vmatprep.subr.bf16.mxu0 0
        %503 = vmatpush1.bf16.xpose.msra.mxu0 0
        %504 = vmatprep.subr.bf16.mxu0 0
        %505 = vmatpush1.bf16.xpose.msra.mxu0 0
        %506 = vmatprep.subr.bf16.mxu0 0
        %507 = vmatpush1.bf16.xpose.msra.mxu0 0
        %508 = vmatprep.subr.bf16.mxu0 0
        %509 = vmatpush1.bf16.xpose.msra.mxu0 0
        %510 = vmatprep.subr.bf16.mxu0 0
        %511 = vmatpush1.bf16.xpose.msra.mxu0 0
        %512 = vmatprep.subr.bf16.mxu0 0
        %513 = vmatpush1.bf16.xpose.msra.mxu0 %v496
        %514 = vmatprep.subr.bf16.mxu0 0
        %515 = vmatpush2.bf16.xpose.msra.mxu0 0
        %516 = vmatprep.subr.bf16.mxu0 0
        %517 = vmatpush2.bf16.xpose.msra.mxu0 0
        %518 = vmatprep.subr.bf16.mxu0 0
        %519 = vmatpush2.bf16.xpose.msra.mxu0 0
        %520 = vmatprep.subr.bf16.mxu0 0
        %521 = vmatpush2.bf16.xpose.msra.mxu0 0
        %522 = vmatprep.subr.bf16.mxu0 0
        %523 = vmatpush2.bf16.xpose.msra.mxu0 0
        %524 = vmatprep.subr.bf16.mxu0 0
        %525 = vmatpush2.bf16.xpose.msra.mxu0 0
        %526 = vmatprep.subr.bf16.mxu0 0
        %527 = vmatpush2.bf16.xpose.msra.mxu0 0
        %528 = vmatprep.subr.bf16.mxu0 0
        %529 = vmatpush2.bf16.xpose.msra.mxu0 0
        %530 = vmatprep.mubr.bf16.mxu0 0
        %531 = vmatmul.mubr.bf16.gmra.mxu0 %v493
        %v532 = vpop.f32.mrf.mxu0
        %v533 = vadd.f32 0.0, %v532
        %v534 = vpop.f32.mrf.mxu0
        %v535 = vpop.f32.mrf.mxu0
        %v536 = vpop.f32.mrf.mxu0
        %537 = vdwg.mxu0
        %v538 = vlaneseq
        %v539 = vshrl.u32 %v538, 7
        %v540 = vlaneseq
        %v541 = vand.u32 %v540, 127
        %vm542 = vcmp.ge.s32.totalorder %v539, %v541
        %v543 = vsel %vm542, %v533, -inf
        %v544 = vsel %vm491, %v543, -inf
        %545 = vmax.xlane.f32.xlu0 %v544
        %v546 = vpop.xlane.xlu0 %545
        %v547 = vsub.f32 %v543, %v546
        %v548 = vmul.f32 %v547, 1.442695
        %v549 = vpow.pop %v548
        %v550 = vsel %vm491, %v549, 0.0
        %551 = vadd.xlane.f32.xlu0 %v550
        %v552 = vpop.xlane.xlu0 %551
        %v553 = vrcp.pop %v552
        %v554 = vmul.f32 %v549, %v553
        %v555 = vpack.c.bf16 %v554, %v554
        %v556 = vpack.c.bf16 %v484, %v484
        %v558 = vsel %vm491, %v555, 0
        %vm560 = vcmask 1043456
        %v562 = vsel %vm560, %v556, 0
        %564 = vmatprep.subr.bf16.mxu0 0
        %565 = vmatpush1.bf16.msra.mxu0 0
        %566 = vmatprep.subr.bf16.mxu0 0
        %567 = vmatpush1.bf16.msra.mxu0 0
        %568 = vmatprep.subr.bf16.mxu0 0
        %569 = vmatpush1.bf16.msra.mxu0 0
        %570 = vmatprep.subr.bf16.mxu0 0
        %571 = vmatpush1.bf16.msra.mxu0 0
        %572 = vmatprep.subr.bf16.mxu0 0
        %573 = vmatpush1.bf16.msra.mxu0 0
        %574 = vmatprep.subr.bf16.mxu0 0
        %575 = vmatpush1.bf16.msra.mxu0 0
        %576 = vmatprep.subr.bf16.mxu0 0
        %577 = vmatpush1.bf16.msra.mxu0 0
        %578 = vmatprep.subr.bf16.mxu0 0
        %579 = vmatpush1.bf16.msra.mxu0 %v562
        %580 = vmatprep.subr.bf16.mxu0 0
        %581 = vmatpush2.bf16.msra.mxu0 0
        %582 = vmatprep.subr.bf16.mxu0 0
        %583 = vmatpush2.bf16.msra.mxu0 0
        %584 = vmatprep.subr.bf16.mxu0 0
        %585 = vmatpush2.bf16.msra.mxu0 0
        %586 = vmatprep.subr.bf16.mxu0 0
        %587 = vmatpush2.bf16.msra.mxu0 0
        %588 = vmatprep.subr.bf16.mxu0 0
        %589 = vmatpush2.bf16.msra.mxu0 0
        %590 = vmatprep.subr.bf16.mxu0 0
        %591 = vmatpush2.bf16.msra.mxu0 0
        %592 = vmatprep.subr.bf16.mxu0 0
        %593 = vmatpush2.bf16.msra.mxu0 0
        %594 = vmatprep.subr.bf16.mxu0 0
        %595 = vmatpush2.bf16.msra.mxu0 0
        %596 = vmatprep.mubr.bf16.mxu0 0
        %597 = vmatmul.mubr.bf16.gmra.mxu0 %v558
        %v598 = vpop.f32.mrf.mxu0
        %v599 = vadd.f32 0.0, %v598
        %v600 = vpop.f32.mrf.mxu0
        %v601 = vpop.f32.mrf.mxu0
        %v602 = vpop.f32.mrf.mxu0
        %603 = vdwg.mxu0
        %v604 = vld [vmem:[#allocation2] sm:$0xff]
        %v605 = vpack.c.bf16 %v599, %v599
        %v606 = vld [vmem:[%s308] sm:$0xf]
        %v608 = vsel %vm491, %v605, 0
        %v611 = vsel %vm560, %v606, 0
        %613 = vmatprep.subr.bf16.mxu0 0
        %614 = vmatpush1.bf16.msra.mxu0 0
        %615 = vmatprep.subr.bf16.mxu0 0
        %616 = vmatpush1.bf16.msra.mxu0 0
        %617 = vmatprep.subr.bf16.mxu0 0
        %618 = vmatpush1.bf16.msra.mxu0 0
        %619 = vmatprep.subr.bf16.mxu0 0
        %620 = vmatpush1.bf16.msra.mxu0 0
        %621 = vmatprep.subr.bf16.mxu0 0
        %622 = vmatpush1.bf16.msra.mxu0 0
        %623 = vmatprep.subr.bf16.mxu0 0
        %624 = vmatpush1.bf16.msra.mxu0 0
        %625 = vmatprep.subr.bf16.mxu0 0
        %626 = vmatpush1.bf16.msra.mxu0 0
        %627 = vmatprep.subr.bf16.mxu0 0
        %628 = vmatpush1.bf16.msra.mxu0 %v611
        %629 = vmatprep.subr.bf16.mxu0 0
        %630 = vmatpush2.bf16.msra.mxu0 0
        %631 = vmatprep.subr.bf16.mxu0 0
        %632 = vmatpush2.bf16.msra.mxu0 0
        %633 = vmatprep.subr.bf16.mxu0 0
        %634 = vmatpush2.bf16.msra.mxu0 0
        %635 = vmatprep.subr.bf16.mxu0 0
        %636 = vmatpush2.bf16.msra.mxu0 0
        %637 = vmatprep.subr.bf16.mxu0 0
        %638 = vmatpush2.bf16.msra.mxu0 0
        %639 = vmatprep.subr.bf16.mxu0 0
        %640 = vmatpush2.bf16.msra.mxu0 0
        %641 = vmatprep.subr.bf16.mxu0 0
        %642 = vmatpush2.bf16.msra.mxu0 0
        %643 = vmatprep.subr.bf16.mxu0 0
        %644 = vmatpush2.bf16.msra.mxu0 0
        %645 = vmatprep.mubr.bf16.mxu0 0
        %646 = vmatmul.mubr.bf16.gmra.mxu0 %v608
        %v647 = vpop.f32.mrf.mxu0
        %v648 = vadd.f32 0.0, %v647
        %v649 = vpop.f32.mrf.mxu0
        %v650 = vpop.f32.mrf.mxu0
        %v651 = vpop.f32.mrf.mxu0
        %652 = vdwg.mxu0
        %v653 = vadd.f32 %v604, %v648
        %654 = vst.msk [vmem:[#allocation2] sm:$0xff] %vm333, %v653
        %p655 = scmp.eq.s32.totalorder %s24, 3
        // Predicated region
        $region45: #{tpu_custom_call.1} parent=39 // pred_check
          %p656 = pneg %p655
        $region46: #{tpu_custom_call.1} parent=39 // pred_check_branch
          %658 = sbr.rel (%p656) target = $region48
        $region47: #{tpu_custom_call.1} parent=39 // pred_region
          %v659 = vld [vmem:[#allocation2] sm:$0xff]
          %660 = vst.msk [vmem:[%s285] sm:$0xff] %vm333, %v659
        $region48: #{tpu_custom_call.1} parent=39 // pred_fallthru
          _
        %s661 = sand.u32 %s169, 1
        %s662 = scalar_lea.sflag [#allocation4], %s661
        %s663 = sand.u32 %s169, 1
        %s664 = smul.addr %s663, 8
        %s665 = scalar_lea.vmem [#allocation3], %s664
        // Predicated region
        $region49: #{tpu_custom_call.1} parent=39 // pred_check
          %p666 = pneg %p179
        $region50: #{tpu_custom_call.1} parent=39 // pred_check_branch
          %668 = sbr.rel (%p666) target = $region52
        $region51: #{tpu_custom_call.1} parent=39 // pred_region
          %s670 = ssub.s32 128, 128
          %671 = vsyncadd %s662, %s670
          %s672 = smul.addr %s23, 128
          %s673 = scalar_lea.hbm %s5, %s672
          %s675 = sshll.u32 %s665, 4
          %s676 = int_to_ptr.vmem [resolvable:$true] %s675
          %678 = dma.vmem_to_hbm [thread:$0]  %s676, 128, %s673, %s662
        $region52: #{tpu_custom_call.1} parent=39 // pred_fallthru
          _
      $region40: #{tpu_custom_call.1} parent=5 // pred_fallthru
        _
      %p679 = scmp.le.s32.totalorder 2, %s14
      // Predicated region
      $region53: #{tpu_custom_call.1} parent=5 // pred_check
        %p680 = pneg %p679
      $region54: #{tpu_custom_call.1} parent=5 // pred_check_branch
        %682 = sbr.rel (%p680) target = $region56
      $region55: #{tpu_custom_call.1} parent=5 // pred_region
        %s683 = ssub.s32 %s14, 2
        // Predicated region
        $region57: #{tpu_custom_call.1} parent=55 // pred_check
          %p684 = pneg %p185
        $region58: #{tpu_custom_call.1} parent=55 // pred_check_branch
          %686 = sbr.rel (%p684) target = $region60
        $region59: #{tpu_custom_call.1} parent=55 // pred_region
          %s687 = sand.u32 %s170, 1
          %s688 = scalar_lea.sflag [#allocation4], %s687
          %s689 = sand.u32 %s170, 1
          %s690 = smul.addr %s689, 8
          %s691 = scalar_lea.vmem [#allocation3], %s690
          %692 = dma.done %s688, 128
        $region60: #{tpu_custom_call.1} parent=55 // pred_fallthru
          _
      $region56: #{tpu_custom_call.1} parent=5 // pred_fallthru
        _
    $region6: #{tpu_custom_call.1} parent=1 // loop_footer
      %s18 = sadd.s32 1, %s14
    $region7: #{tpu_custom_call.1} parent=1 // loop_footer_branch
      %13 = sbr.rel target = $region3
    $region8: #{tpu_custom_call.1} parent=1 // loop_exit
      _
    %693 = vsyncpa [#allocation4], 1
    %s694 = scalar_lea.sflag [#allocation4], 1
    %695 = vsyncpa %s694, 1

</llo_original>
